<compile_context>
chip_gen: v7x
topology: tpu7x:2x2x1
jax: 0.10.0
libtpu: 0.0.40
codegen_flags: <defaults>
</compile_context>

<pallas_src>
import math

import jax
import jax.numpy as jnp
from jax.experimental import pallas as pl
from jax.experimental.pallas import tpu as pltpu


def _make_kernel(W, rep, n_stores):
    def kernel(x_ref, w_ref, b_ref, o_ref, y_ref):
        # Compute the (TB, E) projection once per batch tile; it stays resident
        # in VMEM scratch for all token tiles of this batch tile.
        @pl.when(pl.program_id(1) == 0)
        def _():
            y_ref[...] = (
                jnp.dot(x_ref[...], w_ref[...], preferred_element_type=jnp.float32)
                + b_ref[...]
            )

        # Lane-replicate the small (TB, E) result up to a 128-lane-aligned chunk
        # (TB, W); repeated full-width stores fill the lane-dense output block
        # without building the whole (TB, TT*E) broadcast in vregs.
        y_rep = jnp.tile(y_ref[...], (1, rep)).astype(o_ref.dtype)
        for t in range(n_stores):  # n_stores is small & static (unrolled)
            o_ref[:, t * W:(t + 1) * W] = y_rep

    return kernel


def _pick_batch_tile(B, max_rows):
    """Largest multiple-of-8 divisor of B up to max_rows; else full B."""
    tb = None
    d = 8
    while d <= min(B, max_rows):
        if B % d == 0:
            tb = d
        d += 8
    return tb if tb is not None else B


def _pick_token_tile(T, E, max_lanes):
    """Largest divisor TT of T with TT*E % 128 == 0 and TT*E <= max_lanes; else T."""
    g = 128 // math.gcd(E, 128)  # smallest TT making TT*E lane-aligned
    tt = None
    cand = g
    while cand <= T:
        if T % cand == 0 and cand * E <= max_lanes:
            tt = cand
        cand += g
    return tt if tt is not None else T  # fallback: full token dim (always legal)


def order0_conv_input_proj(x, weight_t, bias, num_tokens, *,
                           out_dtype=None, block_rows=64, block_lanes=2048):
    """x: (B, C); weight_t: (C, E) (pre-transposed nn.Linear weight); bias: (E,).

    Returns (B, num_tokens, E)."""
    B, C = x.shape
    C2, E = weight_t.shape
    assert C == C2
    T = int(num_tokens)
    out_dtype = x.dtype if out_dtype is None else jnp.dtype(out_dtype)
    out_itemsize = jnp.dtype(out_dtype).itemsize

    TB = _pick_batch_tile(B, block_rows)
    TT = _pick_token_tile(T, E, block_lanes)

    # In-kernel store chunk width: multiple of both E and 128 lanes (full vst).
    W = (E * 128) // math.gcd(E, 128)  # lcm(E, 128)
    if (TT * E) % W != 0:
        W = E  # fallback (masked stores, still correct)
    rep = W // E
    n_stores = (TT * E) // W

    bias2d = bias.reshape(1, E)

    cost = pl.CostEstimate(
        flops=2 * B * C * E,
        transcendentals=0,
        bytes_accessed=(B * T * E * out_itemsize
                        + B * C * x.dtype.itemsize
                        + C * E * weight_t.dtype.itemsize
                        + E * bias.dtype.itemsize),
    )

    out_flat = pl.pallas_call(
        _make_kernel(W, rep, n_stores),
        out_shape=jax.ShapeDtypeStruct((B, T * E), out_dtype),
        grid_spec=pltpu.PrefetchScalarGridSpec(
            num_scalar_prefetch=0,
            grid=(B // TB, T // TT),
            in_specs=[
                pl.BlockSpec((TB, C), lambda i, j: (i, 0)),   # x tile, resident over j
                pl.BlockSpec((C, E), lambda i, j: (0, 0)),    # whole weight
                pl.BlockSpec((1, E), lambda i, j: (0, 0)),    # bias
            ],
            out_specs=pl.BlockSpec((TB, TT * E), lambda i, j: (i, j)),
            scratch_shapes=[pltpu.VMEM((TB, E), jnp.float32)],
        ),
        compiler_params=pltpu.CompilerParams(
            dimension_semantics=("parallel", "arbitrary"),
            vmem_limit_bytes=32 * 1024 * 1024,
        ),
        cost_estimate=cost,
    )(x, weight_t, bias2d)

    # Free reshape back to (B, T, E): the flattened layout is row-major identical.
    return out_flat.reshape(B, T, E)


if __name__ == "__main__":
    # Config 1: small shapes matching the module's forward (x is 2-D).
    B, in_chans, num_tokens, embed_dim = 2, 4, 8, 32

    key = jax.random.PRNGKey(0)
    kx, kw, kb = jax.random.split(key, 3)
    x = jax.random.normal(kx, (B, in_chans), dtype=jnp.float32)
    weight = jax.random.normal(kw, (embed_dim, in_chans), dtype=jnp.float32) * 0.1
    bias = jax.random.normal(kb, (embed_dim,), dtype=jnp.float32) * 0.1
    weight_t = weight.T  # (C, E)

    out = order0_conv_input_proj(x, weight_t, bias, num_tokens)
    out = jax.block_until_ready(out)

    ref = jnp.broadcast_to((x @ weight.T + bias)[:, None, :],
                           (B, num_tokens, embed_dim))
    assert out.shape == (B, num_tokens, embed_dim)
    assert jnp.allclose(out, ref, atol=1e-5, rtol=1e-5)

    # Config 2: force a multi-tile grid (2 batch tiles x 8 token tiles) to
    # exercise the pipelined scratch-carry / pl.when path.
    B2, T2 = 16, 32
    k2x, k2w, k2b = jax.random.split(jax.random.PRNGKey(1), 3)
    x2 = jax.random.normal(k2x, (B2, in_chans), dtype=jnp.float32)
    w2 = jax.random.normal(k2w, (embed_dim, in_chans), dtype=jnp.float32) * 0.1
    b2 = jax.random.normal(k2b, (embed_dim,), dtype=jnp.float32) * 0.1
    out2 = order0_conv_input_proj(x2, w2.T, b2, T2, block_rows=8, block_lanes=128)
    out2 = jax.block_until_ready(out2)
    ref2 = jnp.broadcast_to((x2 @ w2.T + b2)[:, None, :], (B2, T2, embed_dim))
    assert jnp.allclose(out2, ref2, atol=1e-5, rtol=1e-5)

    print("KERNEL_OK")
</pallas_src>

<mosaic_0001>
module attributes {stable_mosaic.version = 11 : i64} {
  func.func @kernel(%arg0: i32, %arg1: i32, %arg2: memref<2x4xf32, #tpu.memory_space<vmem>>, %arg3: memref<4x32xf32, #tpu.memory_space<vmem>>, %arg4: memref<1x32xf32, #tpu.memory_space<vmem>>, %arg5: memref<2x256xf32, #tpu.memory_space<vmem>>, %arg6: memref<2x32xf32, #tpu.memory_space<vmem>>) attributes {dimension_semantics = [#tpu.dimension_semantics<parallel>, #tpu.dimension_semantics<arbitrary>], iteration_bounds = array<i64: 1, 1>, scalar_prefetch = 0 : i64, scratch_operands = 1 : i64, tpu.core_type = #tpu.core_type<tc>, window_params = [{transform_indices = @transform_0, window_bounds = array<i64: 2, 4>}, {pipeline_mode = #tpu.pipeline_mode<synchronous>, transform_indices = @transform_1, window_bounds = array<i64: 4, 32>}, {pipeline_mode = #tpu.pipeline_mode<synchronous>, transform_indices = @transform_2, window_bounds = array<i64: 1, 32>}, {transform_indices = @transform_3, window_bounds = array<i64: 2, 256>}]} {
    %c0_i32 = arith.constant 0 : i32
    %0 = arith.cmpi eq, %arg1, %c0_i32 : i32
    %1 = arith.extui %0 : i1 to i32
    %c0_i32_0 = arith.constant 0 : i32
    %2 = arith.cmpi ne, %1, %c0_i32_0 : i32
    scf.if %2 {
      %c0_5 = arith.constant 0 : index
      %c0_6 = arith.constant 0 : index
      %7 = vector.load %arg2[%c0_5, %c0_6] : memref<2x4xf32, #tpu.memory_space<vmem>>, vector<2x4xf32>
      %c0_7 = arith.constant 0 : index
      %c0_8 = arith.constant 0 : index
      %8 = vector.load %arg3[%c0_7, %c0_8] : memref<4x32xf32, #tpu.memory_space<vmem>>, vector<4x32xf32>
      %cst = arith.constant dense<0.000000e+00> : vector<2x32xf32>
      %9 = tpu.matmul %7, %8, %cst {dimension_numbers = #tpu.dot_dimension_numbers<[1], [0], [0], [1], [0, 0, 1, 1], [], []>} : vector<2x4xf32>, vector<4x32xf32>, vector<2x32xf32> -> vector<2x32xf32>
      %c0_9 = arith.constant 0 : index
      %c0_10 = arith.constant 0 : index
      %10 = vector.load %arg4[%c0_9, %c0_10] : memref<1x32xf32, #tpu.memory_space<vmem>>, vector<1x32xf32>
      %11 = vector.broadcast %10 : vector<1x32xf32> to vector<2x32xf32>
      %12 = arith.addf %9, %11 : vector<2x32xf32>
      %c0_11 = arith.constant 0 : index
      %c0_12 = arith.constant 0 : index
      %13 = vector.load %arg6[%c0_11, %c0_12] : memref<2x32xf32, #tpu.memory_space<vmem>>, vector<2x32xf32>
      tpu.vector_store %arg6[%c0_11, %c0_12], %12 {strides = array<i32>} : memref<2x32xf32, #tpu.memory_space<vmem>>, vector<2x32xf32>,
    } else {
    }
    %c0 = arith.constant 0 : index
    %c0_1 = arith.constant 0 : index
    %3 = vector.load %arg6[%c0, %c0_1] : memref<2x32xf32, #tpu.memory_space<vmem>>, vector<2x32xf32>
    %4 = tpu.concatenate %3, %3, %3, %3 in 1 : vector<2x32xf32>, vector<2x32xf32>, vector<2x32xf32>, vector<2x32xf32> -> vector<2x128xf32>
    %c0_2 = arith.constant 0 : index
    %c0_3 = arith.constant 0 : index
    %5 = vector.load %arg5[%c0_2, %c0_3] : memref<2x256xf32, #tpu.memory_space<vmem>>, vector<2x128xf32>
    tpu.vector_store %arg5[%c0_2, %c0_3], %4 {strides = array<i32>} : memref<2x256xf32, #tpu.memory_space<vmem>>, vector<2x128xf32>,
    %c0_4 = arith.constant 0 : index
    %c128 = arith.constant 128 : index
    %6 = vector.load %arg5[%c0_4, %c128] : memref<2x256xf32, #tpu.memory_space<vmem>>, vector<2x128xf32>
    tpu.vector_store %arg5[%c0_4, %c128], %4 {strides = array<i32>} : memref<2x256xf32, #tpu.memory_space<vmem>>, vector<2x128xf32>,
    return
  }
  func.func @transform_0(%arg0: i32, %arg1: i32) -> (i32, i32) {
    %c0_i32 = arith.constant 0 : i32
    %c0_i32_0 = arith.constant 0 : i32
    return %arg0, %c0_i32 : i32, i32
  }
  func.func @transform_1(%arg0: i32, %arg1: i32) -> (i32, i32) {
    %c0_i32 = arith.constant 0 : i32
    %c0_i32_0 = arith.constant 0 : i32
    %c0_i32_1 = arith.constant 0 : i32
    return %c0_i32, %c0_i32_0 : i32, i32
  }
  func.func @transform_2(%arg0: i32, %arg1: i32) -> (i32, i32) {
    %c0_i32 = arith.constant 0 : i32
    %c0_i32_0 = arith.constant 0 : i32
    %c0_i32_1 = arith.constant 0 : i32
    return %c0_i32, %c0_i32_0 : i32, i32
  }
  func.func @transform_3(%arg0: i32, %arg1: i32) -> (i32, i32) {
    %c0_i32 = arith.constant 0 : i32
    return %arg0, %arg1 : i32, i32
  }
}

</mosaic_0001>

<llo_original>
// kernel: tpu_custom_call.1
$region0: #{tpu_custom_call.1}
  #allocation0 [shape = 'u32[]', space=smem, size = 0x4, offset = 0x4, fixed_abs, tag = 'smem constant byte address 0x4 - core index']
  #allocation1 [shape = 'u32[144,128]{1,0:T(1,128)}', space=vmem, size = 0x12000, scoped, tag = 'internal scratch']
  #allocation2 [shape = 'f32[2,32]{1,0:T(2,128)}', space=vmem, size = 0x400, scoped, tag = 'scratch operand']
  %s0 = inlined_call_operand.hbm [shape: f32[2,4], index: 0, kind: input, shape index: {}]
  %s1 = inlined_call_operand.hbm [shape: f32[4,32], index: 1, kind: input, shape index: {}]
  %s2 = inlined_call_operand.vmem [shape: f32[1,32], index: 2, kind: input, shape index: {}]
  %s3 = inlined_call_operand.hbm [shape: f32[2,256], index: 3, kind: output, shape index: {}]
  %s4 = sld [smem:[#allocation0]]
  $region34: #{tpu_custom_call.1} parent=0
    _
  %s6 = ssub.s32 1, %s4
  %s7 = scalar_select 0, %s6, %s4
  $region1: #{tpu_custom_call.1} parent=0
    #allocation3 [shape = 'u8[1024]{0}', space=vmem, size = 0x400, scoped, tag = 'input window, operand 0, single buffered']
    #allocation4 [shape = 's32[1]{0}', space=sflag, size = 0x4, scoped, tag = 'scoped memory for tpu_custom_call.1']
    #allocation5 [shape = 's32[1]{0}', space=sflag, size = 0x4, scoped, tag = 'scoped memory for tpu_custom_call.1']
    #allocation6 [shape = 'u8[2048]{0}', space=vmem, size = 0x800, scoped, tag = 'input window, operand 1, single buffered']
    #allocation7 [shape = 's32[1]{0}', space=sflag, size = 0x4, scoped, tag = 'scoped memory for tpu_custom_call.1']
    #allocation8 [shape = 'u8[2048]{0}', space=vmem, size = 0x800, scoped, tag = 'output window, operand 0, single buffered']
    %8 = vsyncpa [#allocation4], 0
    %9 = vsyncpa [#allocation7], 0
    %10 = vsyncpa [#allocation5], 0
    // Predicated region
    $region2: #{tpu_custom_call.1} parent=1 // pred_check
      _
    $region3: #{tpu_custom_call.1} parent=1 // pred_check_branch
      %12 = sbr.rel (0) target = $region5
    $region4: #{tpu_custom_call.1} parent=1 // pred_region
      %s14 = ssub.s32 32, 32
      %15 = vsyncadd [#allocation4], %s14
      %s17 = sshll.u32 [#allocation3], 4
      %s18 = int_to_ptr.vmem [resolvable:$true] %s17
      %20 = dma.hbm_to_vmem [thread:$0]  %s0, 32, %s18, [#allocation4]
    $region5: #{tpu_custom_call.1} parent=1 // pred_fallthru
      _
    // Predicated region
    $region6: #{tpu_custom_call.1} parent=1 // pred_check
      _
    $region7: #{tpu_custom_call.1} parent=1 // pred_check_branch
      %22 = sbr.rel (0) target = $region9
    $region8: #{tpu_custom_call.1} parent=1 // pred_region
      %s24 = ssub.s32 64, 64
      %25 = vsyncadd [#allocation7], %s24
      %s27 = sshll.u32 [#allocation6], 4
      %s28 = int_to_ptr.vmem [resolvable:$true] %s27
      %30 = dma.hbm_to_vmem [thread:$0]  %s1, 64, %s28, [#allocation7]
    $region9: #{tpu_custom_call.1} parent=1 // pred_fallthru
      _
    // Predicated region
    $region10: #{tpu_custom_call.1} parent=1 // pred_check
      _
    $region11: #{tpu_custom_call.1} parent=1 // pred_check_branch
      %32 = sbr.rel (0) target = $region13
    $region12: #{tpu_custom_call.1} parent=1 // pred_region
      _
    $region13: #{tpu_custom_call.1} parent=1 // pred_fallthru
      _
    // Predicated region
    $region14: #{tpu_custom_call.1} parent=1 // pred_check
      _
    $region15: #{tpu_custom_call.1} parent=1 // pred_check_branch
      %34 = sbr.rel (0) target = $region17
    $region16: #{tpu_custom_call.1} parent=1 // pred_region
      %35 = dma.done [#allocation4], 32
    $region17: #{tpu_custom_call.1} parent=1 // pred_fallthru
      _
    // Predicated region
    $region18: #{tpu_custom_call.1} parent=1 // pred_check
      _
    $region19: #{tpu_custom_call.1} parent=1 // pred_check_branch
      %37 = sbr.rel (0) target = $region21
    $region20: #{tpu_custom_call.1} parent=1 // pred_region
      %38 = dma.done [#allocation7], 64
    $region21: #{tpu_custom_call.1} parent=1 // pred_fallthru
      _
    %p39 = scmp.eq.s32.totalorder 0, 0
    // Predicated region
    $region22: #{tpu_custom_call.1} parent=1 // pred_check
      %p40 = pneg %p39
    $region23: #{tpu_custom_call.1} parent=1 // pred_check_branch
      %42 = sbr.rel (%p40) target = $region25
    $region24: #{tpu_custom_call.1} parent=1 // pred_region
      %v43 = vld [vmem:[#allocation3] sm:$0x3]
      %v44 = vld [vmem:[#allocation6] sm:$0xf]
      %v45 = vld [vmem:[%s2] sm:$0x1]
      %v47 = vlaneseq
      %v48 = vshrl.u32 %v47, 7
      %v49 = vsub.s32 0, %v48
      %v50 = vrot.slane %v45, %v49
      %vm52 = vcmask 31744
      %v54 = vsel %vm52, %v43, 0
      %vm56 = vcmask 1043456
      %v58 = vsel %vm56, %v44, 0
      %60 = vmatprep.subr.mxu0 0.0
      %61 = vmatpush1.msra.mxu0 %v58
      %62 = vmatprep.subr.mxu0 0.0
      %63 = vmatpush1.msra.mxu0 0.0
      %64 = vmatprep.subr.mxu0 0.0
      %65 = vmatpush1.msra.mxu0 0.0
      %66 = vmatprep.subr.mxu0 0.0
      %67 = vmatpush1.msra.mxu0 0.0
      %68 = vmatprep.subr.mxu0 0.0
      %69 = vmatpush1.msra.mxu0 0.0
      %70 = vmatprep.subr.mxu0 0.0
      %71 = vmatpush1.msra.mxu0 0.0
      %72 = vmatprep.subr.mxu0 0.0
      %73 = vmatpush1.msra.mxu0 0.0
      %74 = vmatprep.subr.mxu0 0.0
      %75 = vmatpush1.msra.mxu0 0.0
      %76 = vmatprep.subr.mxu0 0.0
      %77 = vmatpush1.msra.mxu0 0.0
      %78 = vmatprep.subr.mxu0 0.0
      %79 = vmatpush1.msra.mxu0 0.0
      %80 = vmatprep.subr.mxu0 0.0
      %81 = vmatpush1.msra.mxu0 0.0
      %82 = vmatprep.subr.mxu0 0.0
      %83 = vmatpush1.msra.mxu0 0.0
      %84 = vmatprep.subr.mxu0 0.0
      %85 = vmatpush1.msra.mxu0 0.0
      %86 = vmatprep.subr.mxu0 0.0
      %87 = vmatpush1.msra.mxu0 0.0
      %88 = vmatprep.subr.mxu0 0.0
      %89 = vmatpush1.msra.mxu0 0.0
      %90 = vmatprep.subr.mxu0 0.0
      %91 = vmatpush1.msra.mxu0 0.0
      %92 = vmatprep.subr.mxu0 0.0
      %93 = vmatpush1.msra.mxu0 0.0
      %94 = vmatprep.subr.mxu0 0.0
      %95 = vmatpush1.msra.mxu0 0.0
      %96 = vmatprep.subr.mxu0 0.0
      %97 = vmatpush1.msra.mxu0 0.0
      %98 = vmatprep.subr.mxu0 0.0
      %99 = vmatpush1.msra.mxu0 0.0
      %100 = vmatprep.subr.mxu0 0.0
      %101 = vmatpush1.msra.mxu0 0.0
      %102 = vmatprep.subr.mxu0 0.0
      %103 = vmatpush1.msra.mxu0 0.0
      %104 = vmatprep.subr.mxu0 0.0
      %105 = vmatpush1.msra.mxu0 0.0
      %106 = vmatprep.subr.mxu0 0.0
      %107 = vmatpush1.msra.mxu0 0.0
      %108 = vmatprep.subr.mxu0 0.0
      %109 = vmatpush1.msra.mxu0 0.0
      %110 = vmatprep.subr.mxu0 0.0
      %111 = vmatpush1.msra.mxu0 0.0
      %112 = vmatprep.subr.mxu0 0.0
      %113 = vmatpush1.msra.mxu0 0.0
      %114 = vmatprep.subr.mxu0 0.0
      %115 = vmatpush1.msra.mxu0 0.0
      %116 = vmatprep.subr.mxu0 0.0
      %117 = vmatpush1.msra.mxu0 0.0
      %118 = vmatprep.subr.mxu0 0.0
      %119 = vmatpush1.msra.mxu0 0.0
      %120 = vmatprep.subr.mxu0 0.0
      %121 = vmatpush1.msra.mxu0 0.0
      %122 = vmatprep.subr.mxu0 0.0
      %123 = vmatpush1.msra.mxu0 0.0
      %124 = vmatprep.mubr.f32.mxu0 0.0
      %125 = vmatmul.mubr.f32.gmra.mrb[0].mxu0 %v54
      %v126 = vpop.f32.mrb[0].mxu0
      %v127 = vadd.f32 %v50, %v126
      %v128 = vpop.f32.mrb[0].mxu0
      %129 = vdwg.mxu0
      %vm130 = vcmask 254976
      %131 = vst.msk [vmem:[#allocation2] sm:$0x3] %vm130, %v127
    $region25: #{tpu_custom_call.1} parent=1 // pred_fallthru
      _
    %v132 = vld [vmem:[#allocation2] sm:$0x3]
    %134 = vrot.lane.b32.xlu0 %v132, 32
    %v135 = vpop.permute.xlu0 %134
    %137 = vrot.lane.b32.xlu0 %v132, 64
    %v138 = vpop.permute.xlu0 %137
    %140 = vrot.lane.b32.xlu0 %v132, 96
    %v141 = vpop.permute.xlu0 %140
    %vm143 = vcmask 261120
    %v144 = vsel %vm143, %v132, %v135
    %vm145 = vcmask 523264
    %v146 = vsel %vm145, %v144, %v138
    %vm147 = vcmask 785408
    %v148 = vsel %vm147, %v146, %v141
    %149 = vst [vmem:[#allocation8] sm:$0x3] %v148
    %150 = vst [vmem:[#allocation8 + $0x2] sm:$0x3] %v148
    // Predicated region
    $region26: #{tpu_custom_call.1} parent=1 // pred_check
      _
    $region27: #{tpu_custom_call.1} parent=1 // pred_check_branch
      %152 = sbr.rel (0) target = $region29
    $region28: #{tpu_custom_call.1} parent=1 // pred_region
      %s154 = ssub.s32 64, 64
      %155 = vsyncadd [#allocation5], %s154
      %s157 = sshll.u32 [#allocation8], 4
      %s158 = int_to_ptr.vmem [resolvable:$true] %s157
      %160 = dma.vmem_to_hbm [thread:$0]  %s158, 64, %s3, [#allocation5]
    $region29: #{tpu_custom_call.1} parent=1 // pred_fallthru
      _
    // Predicated region
    $region30: #{tpu_custom_call.1} parent=1 // pred_check
      _
    $region31: #{tpu_custom_call.1} parent=1 // pred_check_branch
      %162 = sbr.rel (0) target = $region33
    $region32: #{tpu_custom_call.1} parent=1 // pred_region
      %163 = dma.done [#allocation5], 64
    $region33: #{tpu_custom_call.1} parent=1 // pred_fallthru
      _
    %164 = vsyncpa [#allocation4], 1
    %165 = vsyncpa [#allocation7], 1
    %166 = vsyncpa [#allocation5], 1

</llo_original>
